<compile_context>
chip_gen: v7x
topology: tpu7x:2x2x1
jax: 0.10.0
libtpu: 0.0.40
codegen_flags: <defaults>
</compile_context>

<pallas_src>
import numpy as np
import jax
import jax.numpy as jnp
from jax.experimental import pallas as pl
from jax.experimental.pallas import tpu as pltpu


def find_pad_size(in_shape: int) -> int:
    """Mirror of Padding.findPadSize."""
    return (256 - in_shape) // 2 if in_shape < 256 else 0


def _pick_c_block(N, C, Ho, Wo, itemsize, target_bytes=4 * 1024 * 1024):
    """Pick a channel block so the output block is ~target_bytes, dividing C evenly."""
    plane_bytes = Ho * Wo * itemsize
    c_blk = max(1, min(C, max(1, target_bytes // plane_bytes)))
    while C % c_blk:
        c_blk -= 1
    # Keep at least 2 grid steps when possible so v7x's two TensorCores both get work.
    if N * (C // c_blk) < 2 and C >= 2:
        c_blk = max(1, C // 2)
        while C % c_blk:
            c_blk -= 1
    return c_blk


def _make_pad_kernel(pad: int, H: int, W: int, c_blk: int):
    Ho, Wo = H + 2 * pad, W + 2 * pad

    def kernel(x_ref, o_ref):
        # x_ref block: (1, c_blk, H, W)   o_ref block: (1, c_blk, Ho, Wo)
        dtype = o_ref.dtype
        zero_band = jnp.zeros((1, c_blk, pad, Wo), dtype)
        # Top and bottom pad bands: full-width stores of zeros.
        o_ref[:, :, 0:pad, :] = zero_band
        o_ref[:, :, pad + H:Ho, :] = zero_band
        # Middle band: build [left zeros | x | right zeros] in registers, store once
        # at full output width (single pass, no lane-offset interior scatter).
        side = jnp.zeros((1, c_blk, H, pad), dtype)
        mid = jnp.concatenate([side, x_ref[...].astype(dtype), side], axis=3)
        o_ref[:, :, pad:pad + H, :] = mid

    return kernel


def zero_pad2d_pallas(x, pad: int):
    if pad == 0:
        # ZeroPad2d(0) is the identity: skip the kernel entirely (no HBM traffic).
        return x

    N, C, H, W = x.shape
    Ho, Wo = H + 2 * pad, W + 2 * pad
    itemsize = jnp.dtype(x.dtype).itemsize
    c_blk = _pick_c_block(N, C, Ho, Wo, itemsize)

    in_bytes = N * C * H * W * itemsize
    out_bytes = N * C * Ho * Wo * itemsize

    return pl.pallas_call(
        _make_pad_kernel(pad, H, W, c_blk),
        out_shape=jax.ShapeDtypeStruct((N, C, Ho, Wo), x.dtype),
        grid=(N, C // c_blk),
        in_specs=[pl.BlockSpec((1, c_blk, H, W), lambda n, c: (n, c, 0, 0))],
        out_specs=pl.BlockSpec((1, c_blk, Ho, Wo), lambda n, c: (n, c, 0, 0)),
        compiler_params=pltpu.CompilerParams(
            dimension_semantics=("parallel", "parallel")),
        cost_estimate=pl.CostEstimate(
            flops=0, transcendentals=0, bytes_accessed=in_bytes + out_bytes),
    )(x)


def padding_forward(x):
    """Matches Padding.forward: pad size derived from the (square) spatial size."""
    assert x.ndim == 4, "expected NCHW input"
    assert x.shape[-1] == x.shape[-2], (
        "Padding module assumes a square spatial input")
    pad = find_pad_size(x.shape[-1])
    return zero_pad2d_pallas(x, pad)


if __name__ == "__main__":
    N, C, H, W = 2, 4, 16, 16
    key = jax.random.PRNGKey(0)
    x = jax.random.normal(key, (N, C, H, W), jnp.float32)

    out = jax.block_until_ready(padding_forward(x))

    pad = find_pad_size(W)
    ref = jnp.pad(x, ((0, 0), (0, 0), (pad, pad), (pad, pad)))
    assert out.shape == ref.shape, (out.shape, ref.shape)
    np.testing.assert_allclose(np.asarray(out), np.asarray(ref), rtol=0, atol=0)

    # Also exercise the pad == 0 identity fast path.
    x_big = jax.random.normal(key, (1, 2, 256, 256), jnp.float32)
    out_big = jax.block_until_ready(padding_forward(x_big))
    np.testing.assert_allclose(np.asarray(out_big), np.asarray(x_big), rtol=0, atol=0)

    print("KERNEL_OK")
</pallas_src>

<mosaic_0001>
module attributes {stable_mosaic.version = 11 : i64} {
  func.func @kernel(%arg0: i32, %arg1: i32, %arg2: memref<1x4x16x16xf32, #tpu.memory_space<vmem>>, %arg3: memref<1x4x256x256xf32, #tpu.memory_space<vmem>>) attributes {dimension_semantics = [#tpu.dimension_semantics<parallel>, #tpu.dimension_semantics<parallel>], iteration_bounds = array<i64: 2, 1>, scalar_prefetch = 0 : i64, scratch_operands = 0 : i64, tpu.core_type = #tpu.core_type<tc>, window_params = [{transform_indices = @transform_0, window_bounds = array<i64: 1, 4, 16, 16>}, {transform_indices = @transform_1, window_bounds = array<i64: 1, 4, 256, 256>}]} {
    %cst = arith.constant 0.000000e+00 : f32
    %0 = vector.broadcast %cst : f32 to vector<1x4x120x256xf32>
    %c0 = arith.constant 0 : index
    %c0_0 = arith.constant 0 : index
    %c0_1 = arith.constant 0 : index
    %c0_2 = arith.constant 0 : index
    %1 = vector.load %arg3[%c0, %c0_0, %c0_1, %c0_2] : memref<1x4x256x256xf32, #tpu.memory_space<vmem>>, vector<1x4x120x256xf32>
    tpu.vector_store %arg3[%c0, %c0_0, %c0_1, %c0_2], %0 {strides = array<i32>} : memref<1x4x256x256xf32, #tpu.memory_space<vmem>>, vector<1x4x120x256xf32>,
    %c0_3 = arith.constant 0 : index
    %c0_4 = arith.constant 0 : index
    %c136 = arith.constant 136 : index
    %c0_5 = arith.constant 0 : index
    %2 = vector.load %arg3[%c0_3, %c0_4, %c136, %c0_5] : memref<1x4x256x256xf32, #tpu.memory_space<vmem>>, vector<1x4x120x256xf32>
    tpu.vector_store %arg3[%c0_3, %c0_4, %c136, %c0_5], %0 {strides = array<i32>} : memref<1x4x256x256xf32, #tpu.memory_space<vmem>>, vector<1x4x120x256xf32>,
    %cst_6 = arith.constant 0.000000e+00 : f32
    %3 = vector.broadcast %cst_6 : f32 to vector<1x4x16x120xf32>
    %c0_7 = arith.constant 0 : index
    %c0_8 = arith.constant 0 : index
    %c0_9 = arith.constant 0 : index
    %c0_10 = arith.constant 0 : index
    %4 = vector.load %arg2[%c0_7, %c0_8, %c0_9, %c0_10] : memref<1x4x16x16xf32, #tpu.memory_space<vmem>>, vector<1x4x16x16xf32>
    %5 = tpu.concatenate %3, %4, %3 in 3 : vector<1x4x16x120xf32>, vector<1x4x16x16xf32>, vector<1x4x16x120xf32> -> vector<1x4x16x256xf32>
    %c0_11 = arith.constant 0 : index
    %c0_12 = arith.constant 0 : index
    %c120 = arith.constant 120 : index
    %c0_13 = arith.constant 0 : index
    %6 = vector.load %arg3[%c0_11, %c0_12, %c120, %c0_13] : memref<1x4x256x256xf32, #tpu.memory_space<vmem>>, vector<1x4x16x256xf32>
    tpu.vector_store %arg3[%c0_11, %c0_12, %c120, %c0_13], %5 {strides = array<i32>} : memref<1x4x256x256xf32, #tpu.memory_space<vmem>>, vector<1x4x16x256xf32>,
    return
  }
  func.func @transform_0(%arg0: i32, %arg1: i32) -> (i32, i32, i32, i32) {
    %c0_i32 = arith.constant 0 : i32
    %c0_i32_0 = arith.constant 0 : i32
    %c0_i32_1 = arith.constant 0 : i32
    return %arg0, %arg1, %c0_i32, %c0_i32_0 : i32, i32, i32, i32
  }
  func.func @transform_1(%arg0: i32, %arg1: i32) -> (i32, i32, i32, i32) {
    %c0_i32 = arith.constant 0 : i32
    %c0_i32_0 = arith.constant 0 : i32
    %c0_i32_1 = arith.constant 0 : i32
    return %arg0, %arg1, %c0_i32, %c0_i32_0 : i32, i32, i32, i32
  }
}

</mosaic_0001>

<llo_original>
// kernel: tpu_custom_call.1
$region0: #{tpu_custom_call.1}
  #allocation0 [shape = 'u32[]', space=smem, size = 0x4, offset = 0x4, fixed_abs, tag = 'smem constant byte address 0x4 - core index']
  #allocation1 [shape = 'u32[144,128]{1,0:T(1,128)}', space=vmem, size = 0x12000, scoped, tag = 'internal scratch']
  %s0 = inlined_call_operand.hbm [shape: f32[2,4,16,16], index: 0, kind: input, shape index: {}]
  %s1 = inlined_call_operand.hbm [shape: f32[2,4,256,256], index: 1, kind: output, shape index: {}]
  %s2 = sld [smem:[#allocation0]]
  $region41: #{tpu_custom_call.1} parent=0
    _
  %s4 = ssub.s32 1, %s2
  %s5 = scalar_select 0, %s4, %s2
  $region1: #{tpu_custom_call.1} parent=0
    #allocation2 [shape = 'u8[65536]{0}', space=vmem, size = 0x10000, scoped, tag = 'input window, operand 0']
    #allocation3 [shape = 's32[2]{0}', space=sflag, size = 0x8, scoped, tag = 'scoped memory for tpu_custom_call.1']
    #allocation4 [shape = 's32[2]{0}', space=sflag, size = 0x8, scoped, tag = 'scoped memory for tpu_custom_call.1']
    #allocation5 [shape = 'u8[2097152]{0}', space=vmem, size = 0x200000, scoped, tag = 'output window, operand 0']
    %6 = vsyncpa [#allocation3], 0
    %s7 = scalar_lea.sflag [#allocation3], 1
    %8 = vsyncpa %s7, 0
    %9 = vsyncpa [#allocation4], 0
    %s10 = scalar_lea.sflag [#allocation4], 1
    %11 = vsyncpa %s10, 0
    loop: start=0, step=1, limit=4
    $region2: #{tpu_custom_call.1} parent=1 // loop_pre_header
      _
    $region3: #{tpu_custom_call.1} parent=1 // loop_header
      %s13 = sphi 0, %s17
      %p14 = scmp.ge.s32.totalorder %s13, 4
      %s20 = sphi 0, %s32
      %s21 = sphi 0, %s28
      %s22 = sphi 0, %s20
      %s23 = sphi 0, %s21
      %s24 = sphi 0, %s22
      %s25 = sphi 0, %s23
      %s37 = sphi 0, %s39
      %s40 = sphi 0, %s37
      %s41 = sphi 0, %s40
      %s57 = sphi 0, %s41
      %s65 = sphi 0, %s67
      %s68 = sphi 0, %s65
      %s69 = sphi 0, %s68
      %s85 = sphi 0, %s69
    $region4: #{tpu_custom_call.1} parent=1 // loop_header_branch
      %16 = sbr.rel (%p14) target = $region8
    $region5: #{tpu_custom_call.1} parent=1 // loop_body
      %s18 = ssub.s32 %s13, 1
      %s19 = ssub.s32 %s13, 2
      %s26 = sadd.s32 1, %s21
      %p27 = scmp.ge.s32.totalorder %s26, 1
      %s28 = scalar_select %p27, 0, %s26
      %s29 = sadd.s32 1, %s20
      %s30 = scalar_select %p27, %s29, %s20
      %p31 = scmp.ge.s32.totalorder %s30, 2
      %s32 = scalar_select %p31, 0, %s30
      %s33 = ssub.s32 %s20, %s32
      %s34 = ssub.s32 %s21, %s28
      %s35 = sor.u32 %s33, %s34
      %p36 = scmp.eq.s32.totalorder %s35, 0
      %s38 = sadd.s32 %s37, 1
      %s39 = scalar_select %p36, %s37, %s38
      %p42 = pneg %p36
      %p43 = scmp.eq.s32.totalorder %s13, 1
      %p44 = por %p42, %p43
      %p45 = scmp.ne.s32.totalorder %s37, %s40
      %p46 = scmp.eq.s32.totalorder %s13, 0
      %p47 = por %p45, %p46
      %p48 = scmp.ne.s32.totalorder %s37, %s40
      %p49 = scmp.eq.s32.totalorder %s18, 1
      %p50 = por %p48, %p49
      %p51 = scmp.ne.s32.totalorder %s40, %s41
      %p52 = scmp.eq.s32.totalorder %s18, 0
      %p53 = por %p51, %p52
      %p54 = scmp.ne.s32.totalorder %s40, %s41
      %p55 = scmp.eq.s32.totalorder %s19, 1
      %p56 = por %p54, %p55
      %p58 = scmp.ne.s32.totalorder %s41, %s57
      %p59 = scmp.eq.s32.totalorder %s19, 0
      %p60 = por %p58, %p59
      %s61 = ssub.s32 %s20, %s32
      %s62 = ssub.s32 %s21, %s28
      %s63 = sor.u32 %s61, %s62
      %p64 = scmp.eq.s32.totalorder %s63, 0
      %s66 = sadd.s32 %s65, 1
      %s67 = scalar_select %p64, %s65, %s66
      %p70 = pneg %p64
      %p71 = scmp.eq.s32.totalorder %s13, 1
      %p72 = por %p70, %p71
      %p73 = scmp.ne.s32.totalorder %s65, %s68
      %p74 = scmp.eq.s32.totalorder %s13, 0
      %p75 = por %p73, %p74
      %p76 = scmp.ne.s32.totalorder %s65, %s68
      %p77 = scmp.eq.s32.totalorder %s18, 1
      %p78 = por %p76, %p77
      %p79 = scmp.ne.s32.totalorder %s68, %s69
      %p80 = scmp.eq.s32.totalorder %s18, 0
      %p81 = por %p79, %p80
      %p82 = scmp.ne.s32.totalorder %s68, %s69
      %p83 = scmp.eq.s32.totalorder %s19, 1
      %p84 = por %p82, %p83
      %p86 = scmp.ne.s32.totalorder %s69, %s85
      %p87 = scmp.eq.s32.totalorder %s19, 0
      %p88 = por %p86, %p87
      %p89 = scmp.le.s32.totalorder 1, %s13
      %p90 = scmp.lt.s32.totalorder %s13, 3
      %p91 = pnand %p89, %p90
      %p92 = pneg %p91
      // Predicated region
      $region9: #{tpu_custom_call.1} parent=5 // pred_check
        _
      $region10: #{tpu_custom_call.1} parent=5 // pred_check_branch
        %94 = sbr.rel (%p91) target = $region12
      $region11: #{tpu_custom_call.1} parent=5 // pred_region
        %s95 = ssub.s32 %s13, 1
      $region12: #{tpu_custom_call.1} parent=5 // pred_fallthru
        _
      %p96 = scmp.lt.s32.totalorder %s13, 2
      // Predicated region
      $region13: #{tpu_custom_call.1} parent=5 // pred_check
        %p97 = pneg %p96
      $region14: #{tpu_custom_call.1} parent=5 // pred_check_branch
        %99 = sbr.rel (%p97) target = $region16
      $region15: #{tpu_custom_call.1} parent=5 // pred_region
        // Predicated region
        $region17: #{tpu_custom_call.1} parent=15 // pred_check
          %p100 = pneg %p47
        $region18: #{tpu_custom_call.1} parent=15 // pred_check_branch
          %102 = sbr.rel (%p100) target = $region20
        $region19: #{tpu_custom_call.1} parent=15 // pred_region
          %s103 = sand.u32 %s37, 1
          %s104 = scalar_lea.sflag [#allocation3], %s103
          %s105 = sand.u32 %s37, 1
          %s106 = smul.addr %s105, 64
          %s107 = scalar_lea.vmem [#allocation2], %s106
          %s108 = smul.u32 4, %s21
          %s110 = ssub.s32 1024, 1024
          %111 = vsyncadd %s104, %s110
          %s112 = smul.addr %s108, 2
          %s113 = smul.addr %s20, 8
          %s114 = sadd.s32 %s112, %s113
          %s115 = smul.addr %s114, 128
          %s116 = scalar_lea.hbm %s0, %s115
          %s117 = sshll.u32 %s107, 4
          %s118 = int_to_ptr.vmem [resolvable:$true] %s117
          %123 = dma.hbm_to_vmem [thread:$0]  %s116, 1024, %s118, %s104, 128, 128, 8
        $region20: #{tpu_custom_call.1} parent=15 // pred_fallthru
          _
      $region16: #{tpu_custom_call.1} parent=5 // pred_fallthru
        _
      %p124 = scmp.le.s32.totalorder 1, %s13
      %p125 = scmp.lt.s32.totalorder %s13, 3
      %p126 = pnand %p124, %p125
      %p127 = pneg %p126
      // Predicated region
      $region21: #{tpu_custom_call.1} parent=5 // pred_check
        _
      $region22: #{tpu_custom_call.1} parent=5 // pred_check_branch
        %129 = sbr.rel (%p126) target = $region24
      $region23: #{tpu_custom_call.1} parent=5 // pred_region
        %s130 = ssub.s32 %s13, 1
        %s131 = sand.u32 %s40, 1
        %s132 = scalar_lea.sflag [#allocation3], %s131
        %s133 = sand.u32 %s40, 1
        %s134 = smul.addr %s133, 64
        %s135 = scalar_lea.vmem [#allocation2], %s134
        // Predicated region
        $region25: #{tpu_custom_call.1} parent=23 // pred_check
          %p136 = pneg %p53
        $region26: #{tpu_custom_call.1} parent=23 // pred_check_branch
          %138 = sbr.rel (%p136) target = $region28
        $region27: #{tpu_custom_call.1} parent=23 // pred_region
          %139 = dma.done %s132, 1024
        $region28: #{tpu_custom_call.1} parent=23 // pred_fallthru
          _
        %s140 = sand.u32 %s40, 1
        %s141 = scalar_lea.sflag [#allocation3], %s140
        %s142 = sand.u32 %s40, 1
        %s143 = smul.addr %s142, 64
        %s144 = scalar_lea.vmem [#allocation2], %s143
        %p145 = pneg %p53
        %p146 = pneg %p50
        %p147 = pneg %p81
        %p148 = pneg %p78
        %s149 = sand.u32 %s68, 1
        %s150 = scalar_lea.sflag [#allocation4], %s149
        %s151 = sand.u32 %s68, 1
        %s152 = smul.addr %s151, 2048
        %s153 = scalar_lea.vmem [#allocation5], %s152
        %s154 = smul.u32 4, %s23
        %s155 = smul.u32 4, %s23
        %156 = vst [vmem:[%s153] sm:$0xff] 0.0
        %157 = vst [vmem:[%s153 + $0x8] sm:$0xff] 0.0
        %158 = vst [vmem:[%s153 + $0x10] sm:$0xff] 0.0
        %159 = vst [vmem:[%s153 + $0x18] sm:$0xff] 0.0
        %160 = vst [vmem:[%s153 + $0x20] sm:$0xff] 0.0
        %161 = vst [vmem:[%s153 + $0x28] sm:$0xff] 0.0
        %162 = vst [vmem:[%s153 + $0x30] sm:$0xff] 0.0
        %163 = vst [vmem:[%s153 + $0x38] sm:$0xff] 0.0
        %164 = vst [vmem:[%s153 + $0x40] sm:$0xff] 0.0
        %165 = vst [vmem:[%s153 + $0x48] sm:$0xff] 0.0
        %166 = vst [vmem:[%s153 + $0x50] sm:$0xff] 0.0
        %167 = vst [vmem:[%s153 + $0x58] sm:$0xff] 0.0
        %168 = vst [vmem:[%s153 + $0x60] sm:$0xff] 0.0
        %169 = vst [vmem:[%s153 + $0x68] sm:$0xff] 0.0
        %170 = vst [vmem:[%s153 + $0x70] sm:$0xff] 0.0
        %171 = vst [vmem:[%s153 + $0x78] sm:$0xff] 0.0
        %172 = vst [vmem:[%s153 + $0x80] sm:$0xff] 0.0
        %173 = vst [vmem:[%s153 + $0x88] sm:$0xff] 0.0
        %174 = vst [vmem:[%s153 + $0x90] sm:$0xff] 0.0
        %175 = vst [vmem:[%s153 + $0x98] sm:$0xff] 0.0
        %176 = vst [vmem:[%s153 + $0xa0] sm:$0xff] 0.0
        %177 = vst [vmem:[%s153 + $0xa8] sm:$0xff] 0.0
        %178 = vst [vmem:[%s153 + $0xb0] sm:$0xff] 0.0
        %179 = vst [vmem:[%s153 + $0xb8] sm:$0xff] 0.0
        %180 = vst [vmem:[%s153 + $0xc0] sm:$0xff] 0.0
        %181 = vst [vmem:[%s153 + $0xc8] sm:$0xff] 0.0
        %182 = vst [vmem:[%s153 + $0xd0] sm:$0xff] 0.0
        %183 = vst [vmem:[%s153 + $0xd8] sm:$0xff] 0.0
        %184 = vst [vmem:[%s153 + $0xe0] sm:$0xff] 0.0
        %185 = vst [vmem:[%s153 + $0xe8] sm:$0xff] 0.0
        %186 = vst [vmem:[%s153 + $0x200] sm:$0xff] 0.0
        %187 = vst [vmem:[%s153 + $0x208] sm:$0xff] 0.0
        %188 = vst [vmem:[%s153 + $0x210] sm:$0xff] 0.0
        %189 = vst [vmem:[%s153 + $0x218] sm:$0xff] 0.0
        %190 = vst [vmem:[%s153 + $0x220] sm:$0xff] 0.0
        %191 = vst [vmem:[%s153 + $0x228] sm:$0xff] 0.0
        %192 = vst [vmem:[%s153 + $0x230] sm:$0xff] 0.0
        %193 = vst [vmem:[%s153 + $0x238] sm:$0xff] 0.0
        %194 = vst [vmem:[%s153 + $0x240] sm:$0xff] 0.0
        %195 = vst [vmem:[%s153 + $0x248] sm:$0xff] 0.0
        %196 = vst [vmem:[%s153 + $0x250] sm:$0xff] 0.0
        %197 = vst [vmem:[%s153 + $0x258] sm:$0xff] 0.0
        %198 = vst [vmem:[%s153 + $0x260] sm:$0xff] 0.0
        %199 = vst [vmem:[%s153 + $0x268] sm:$0xff] 0.0
        %200 = vst [vmem:[%s153 + $0x270] sm:$0xff] 0.0
        %201 = vst [vmem:[%s153 + $0x278] sm:$0xff] 0.0
        %202 = vst [vmem:[%s153 + $0x280] sm:$0xff] 0.0
        %203 = vst [vmem:[%s153 + $0x288] sm:$0xff] 0.0
        %204 = vst [vmem:[%s153 + $0x290] sm:$0xff] 0.0
        %205 = vst [vmem:[%s153 + $0x298] sm:$0xff] 0.0
        %206 = vst [vmem:[%s153 + $0x2a0] sm:$0xff] 0.0
        %207 = vst [vmem:[%s153 + $0x2a8] sm:$0xff] 0.0
        %208 = vst [vmem:[%s153 + $0x2b0] sm:$0xff] 0.0
        %209 = vst [vmem:[%s153 + $0x2b8] sm:$0xff] 0.0
        %210 = vst [vmem:[%s153 + $0x2c0] sm:$0xff] 0.0
        %211 = vst [vmem:[%s153 + $0x2c8] sm:$0xff] 0.0
        %212 = vst [vmem:[%s153 + $0x2d0] sm:$0xff] 0.0
        %213 = vst [vmem:[%s153 + $0x2d8] sm:$0xff] 0.0
        %214 = vst [vmem:[%s153 + $0x2e0] sm:$0xff] 0.0
        %215 = vst [vmem:[%s153 + $0x2e8] sm:$0xff] 0.0
        %216 = vst [vmem:[%s153 + $0x400] sm:$0xff] 0.0
        %217 = vst [vmem:[%s153 + $0x408] sm:$0xff] 0.0
        %218 = vst [vmem:[%s153 + $0x410] sm:$0xff] 0.0
        %219 = vst [vmem:[%s153 + $0x418] sm:$0xff] 0.0
        %220 = vst [vmem:[%s153 + $0x420] sm:$0xff] 0.0
        %221 = vst [vmem:[%s153 + $0x428] sm:$0xff] 0.0
        %222 = vst [vmem:[%s153 + $0x430] sm:$0xff] 0.0
        %223 = vst [vmem:[%s153 + $0x438] sm:$0xff] 0.0
        %224 = vst [vmem:[%s153 + $0x440] sm:$0xff] 0.0
        %225 = vst [vmem:[%s153 + $0x448] sm:$0xff] 0.0
        %226 = vst [vmem:[%s153 + $0x450] sm:$0xff] 0.0
        %227 = vst [vmem:[%s153 + $0x458] sm:$0xff] 0.0
        %228 = vst [vmem:[%s153 + $0x460] sm:$0xff] 0.0
        %229 = vst [vmem:[%s153 + $0x468] sm:$0xff] 0.0
        %230 = vst [vmem:[%s153 + $0x470] sm:$0xff] 0.0
        %231 = vst [vmem:[%s153 + $0x478] sm:$0xff] 0.0
        %232 = vst [vmem:[%s153 + $0x480] sm:$0xff] 0.0
        %233 = vst [vmem:[%s153 + $0x488] sm:$0xff] 0.0
        %234 = vst [vmem:[%s153 + $0x490] sm:$0xff] 0.0
        %235 = vst [vmem:[%s153 + $0x498] sm:$0xff] 0.0
        %236 = vst [vmem:[%s153 + $0x4a0] sm:$0xff] 0.0
        %237 = vst [vmem:[%s153 + $0x4a8] sm:$0xff] 0.0
        %238 = vst [vmem:[%s153 + $0x4b0] sm:$0xff] 0.0
        %239 = vst [vmem:[%s153 + $0x4b8] sm:$0xff] 0.0
        %240 = vst [vmem:[%s153 + $0x4c0] sm:$0xff] 0.0
        %241 = vst [vmem:[%s153 + $0x4c8] sm:$0xff] 0.0
        %242 = vst [vmem:[%s153 + $0x4d0] sm:$0xff] 0.0
        %243 = vst [vmem:[%s153 + $0x4d8] sm:$0xff] 0.0
        %244 = vst [vmem:[%s153 + $0x4e0] sm:$0xff] 0.0
        %245 = vst [vmem:[%s153 + $0x4e8] sm:$0xff] 0.0
        %246 = vst [vmem:[%s153 + $0x600] sm:$0xff] 0.0
        %247 = vst [vmem:[%s153 + $0x608] sm:$0xff] 0.0
        %248 = vst [vmem:[%s153 + $0x610] sm:$0xff] 0.0
        %249 = vst [vmem:[%s153 + $0x618] sm:$0xff] 0.0
        %250 = vst [vmem:[%s153 + $0x620] sm:$0xff] 0.0
        %251 = vst [vmem:[%s153 + $0x628] sm:$0xff] 0.0
        %252 = vst [vmem:[%s153 + $0x630] sm:$0xff] 0.0
        %253 = vst [vmem:[%s153 + $0x638] sm:$0xff] 0.0
        %254 = vst [vmem:[%s153 + $0x640] sm:$0xff] 0.0
        %255 = vst [vmem:[%s153 + $0x648] sm:$0xff] 0.0
        %256 = vst [vmem:[%s153 + $0x650] sm:$0xff] 0.0
        %257 = vst [vmem:[%s153 + $0x658] sm:$0xff] 0.0
        %258 = vst [vmem:[%s153 + $0x660] sm:$0xff] 0.0
        %259 = vst [vmem:[%s153 + $0x668] sm:$0xff] 0.0
        %260 = vst [vmem:[%s153 + $0x670] sm:$0xff] 0.0
        %261 = vst [vmem:[%s153 + $0x678] sm:$0xff] 0.0
        %262 = vst [vmem:[%s153 + $0x680] sm:$0xff] 0.0
        %263 = vst [vmem:[%s153 + $0x688] sm:$0xff] 0.0
        %264 = vst [vmem:[%s153 + $0x690] sm:$0xff] 0.0
        %265 = vst [vmem:[%s153 + $0x698] sm:$0xff] 0.0
        %266 = vst [vmem:[%s153 + $0x6a0] sm:$0xff] 0.0
        %267 = vst [vmem:[%s153 + $0x6a8] sm:$0xff] 0.0
        %268 = vst [vmem:[%s153 + $0x6b0] sm:$0xff] 0.0
        %269 = vst [vmem:[%s153 + $0x6b8] sm:$0xff] 0.0
        %270 = vst [vmem:[%s153 + $0x6c0] sm:$0xff] 0.0
        %271 = vst [vmem:[%s153 + $0x6c8] sm:$0xff] 0.0
        %272 = vst [vmem:[%s153 + $0x6d0] sm:$0xff] 0.0
        %273 = vst [vmem:[%s153 + $0x6d8] sm:$0xff] 0.0
        %274 = vst [vmem:[%s153 + $0x6e0] sm:$0xff] 0.0
        %275 = vst [vmem:[%s153 + $0x6e8] sm:$0xff] 0.0
        %276 = vst [vmem:[%s153 + $0x110] sm:$0xff] 0.0
        %277 = vst [vmem:[%s153 + $0x118] sm:$0xff] 0.0
        %278 = vst [vmem:[%s153 + $0x120] sm:$0xff] 0.0
        %279 = vst [vmem:[%s153 + $0x128] sm:$0xff] 0.0
        %280 = vst [vmem:[%s153 + $0x130] sm:$0xff] 0.0
        %281 = vst [vmem:[%s153 + $0x138] sm:$0xff] 0.0
        %282 = vst [vmem:[%s153 + $0x140] sm:$0xff] 0.0
        %283 = vst [vmem:[%s153 + $0x148] sm:$0xff] 0.0
        %284 = vst [vmem:[%s153 + $0x150] sm:$0xff] 0.0
        %285 = vst [vmem:[%s153 + $0x158] sm:$0xff] 0.0
        %286 = vst [vmem:[%s153 + $0x160] sm:$0xff] 0.0
        %287 = vst [vmem:[%s153 + $0x168] sm:$0xff] 0.0
        %288 = vst [vmem:[%s153 + $0x170] sm:$0xff] 0.0
        %289 = vst [vmem:[%s153 + $0x178] sm:$0xff] 0.0
        %290 = vst [vmem:[%s153 + $0x180] sm:$0xff] 0.0
        %291 = vst [vmem:[%s153 + $0x188] sm:$0xff] 0.0
        %292 = vst [vmem:[%s153 + $0x190] sm:$0xff] 0.0
        %293 = vst [vmem:[%s153 + $0x198] sm:$0xff] 0.0
        %294 = vst [vmem:[%s153 + $0x1a0] sm:$0xff] 0.0
        %295 = vst [vmem:[%s153 + $0x1a8] sm:$0xff] 0.0
        %296 = vst [vmem:[%s153 + $0x1b0] sm:$0xff] 0.0
        %297 = vst [vmem:[%s153 + $0x1b8] sm:$0xff] 0.0
        %298 = vst [vmem:[%s153 + $0x1c0] sm:$0xff] 0.0
        %299 = vst [vmem:[%s153 + $0x1c8] sm:$0xff] 0.0
        %300 = vst [vmem:[%s153 + $0x1d0] sm:$0xff] 0.0
        %301 = vst [vmem:[%s153 + $0x1d8] sm:$0xff] 0.0
        %302 = vst [vmem:[%s153 + $0x1e0] sm:$0xff] 0.0
        %303 = vst [vmem:[%s153 + $0x1e8] sm:$0xff] 0.0
        %304 = vst [vmem:[%s153 + $0x1f0] sm:$0xff] 0.0
        %305 = vst [vmem:[%s153 + $0x1f8] sm:$0xff] 0.0
        %306 = vst [vmem:[%s153 + $0x310] sm:$0xff] 0.0
        %307 = vst [vmem:[%s153 + $0x318] sm:$0xff] 0.0
        %308 = vst [vmem:[%s153 + $0x320] sm:$0xff] 0.0
        %309 = vst [vmem:[%s153 + $0x328] sm:$0xff] 0.0
        %310 = vst [vmem:[%s153 + $0x330] sm:$0xff] 0.0
        %311 = vst [vmem:[%s153 + $0x338] sm:$0xff] 0.0
        %312 = vst [vmem:[%s153 + $0x340] sm:$0xff] 0.0
        %313 = vst [vmem:[%s153 + $0x348] sm:$0xff] 0.0
        %314 = vst [vmem:[%s153 + $0x350] sm:$0xff] 0.0
        %315 = vst [vmem:[%s153 + $0x358] sm:$0xff] 0.0
        %316 = vst [vmem:[%s153 + $0x360] sm:$0xff] 0.0
        %317 = vst [vmem:[%s153 + $0x368] sm:$0xff] 0.0
        %318 = vst [vmem:[%s153 + $0x370] sm:$0xff] 0.0
        %319 = vst [vmem:[%s153 + $0x378] sm:$0xff] 0.0
        %320 = vst [vmem:[%s153 + $0x380] sm:$0xff] 0.0
        %321 = vst [vmem:[%s153 + $0x388] sm:$0xff] 0.0
        %322 = vst [vmem:[%s153 + $0x390] sm:$0xff] 0.0
        %323 = vst [vmem:[%s153 + $0x398] sm:$0xff] 0.0
        %324 = vst [vmem:[%s153 + $0x3a0] sm:$0xff] 0.0
        %325 = vst [vmem:[%s153 + $0x3a8] sm:$0xff] 0.0
        %326 = vst [vmem:[%s153 + $0x3b0] sm:$0xff] 0.0
        %327 = vst [vmem:[%s153 + $0x3b8] sm:$0xff] 0.0
        %328 = vst [vmem:[%s153 + $0x3c0] sm:$0xff] 0.0
        %329 = vst [vmem:[%s153 + $0x3c8] sm:$0xff] 0.0
        %330 = vst [vmem:[%s153 + $0x3d0] sm:$0xff] 0.0
        %331 = vst [vmem:[%s153 + $0x3d8] sm:$0xff] 0.0
        %332 = vst [vmem:[%s153 + $0x3e0] sm:$0xff] 0.0
        %333 = vst [vmem:[%s153 + $0x3e8] sm:$0xff] 0.0
        %334 = vst [vmem:[%s153 + $0x3f0] sm:$0xff] 0.0
        %335 = vst [vmem:[%s153 + $0x3f8] sm:$0xff] 0.0
        %336 = vst [vmem:[%s153 + $0x510] sm:$0xff] 0.0
        %337 = vst [vmem:[%s153 + $0x518] sm:$0xff] 0.0
        %338 = vst [vmem:[%s153 + $0x520] sm:$0xff] 0.0
        %339 = vst [vmem:[%s153 + $0x528] sm:$0xff] 0.0
        %340 = vst [vmem:[%s153 + $0x530] sm:$0xff] 0.0
        %341 = vst [vmem:[%s153 + $0x538] sm:$0xff] 0.0
        %342 = vst [vmem:[%s153 + $0x540] sm:$0xff] 0.0
        %343 = vst [vmem:[%s153 + $0x548] sm:$0xff] 0.0
        %344 = vst [vmem:[%s153 + $0x550] sm:$0xff] 0.0
        %345 = vst [vmem:[%s153 + $0x558] sm:$0xff] 0.0
        %346 = vst [vmem:[%s153 + $0x560] sm:$0xff] 0.0
        %347 = vst [vmem:[%s153 + $0x568] sm:$0xff] 0.0
        %348 = vst [vmem:[%s153 + $0x570] sm:$0xff] 0.0
        %349 = vst [vmem:[%s153 + $0x578] sm:$0xff] 0.0
        %350 = vst [vmem:[%s153 + $0x580] sm:$0xff] 0.0
        %351 = vst [vmem:[%s153 + $0x588] sm:$0xff] 0.0
        %352 = vst [vmem:[%s153 + $0x590] sm:$0xff] 0.0
        %353 = vst [vmem:[%s153 + $0x598] sm:$0xff] 0.0
        %354 = vst [vmem:[%s153 + $0x5a0] sm:$0xff] 0.0
        %355 = vst [vmem:[%s153 + $0x5a8] sm:$0xff] 0.0
        %356 = vst [vmem:[%s153 + $0x5b0] sm:$0xff] 0.0
        %357 = vst [vmem:[%s153 + $0x5b8] sm:$0xff] 0.0
        %358 = vst [vmem:[%s153 + $0x5c0] sm:$0xff] 0.0
        %359 = vst [vmem:[%s153 + $0x5c8] sm:$0xff] 0.0
        %360 = vst [vmem:[%s153 + $0x5d0] sm:$0xff] 0.0
        %361 = vst [vmem:[%s153 + $0x5d8] sm:$0xff] 0.0
        %362 = vst [vmem:[%s153 + $0x5e0] sm:$0xff] 0.0
        %363 = vst [vmem:[%s153 + $0x5e8] sm:$0xff] 0.0
        %364 = vst [vmem:[%s153 + $0x5f0] sm:$0xff] 0.0
        %365 = vst [vmem:[%s153 + $0x5f8] sm:$0xff] 0.0
        %366 = vst [vmem:[%s153 + $0x710] sm:$0xff] 0.0
        %367 = vst [vmem:[%s153 + $0x718] sm:$0xff] 0.0
        %368 = vst [vmem:[%s153 + $0x720] sm:$0xff] 0.0
        %369 = vst [vmem:[%s153 + $0x728] sm:$0xff] 0.0
        %370 = vst [vmem:[%s153 + $0x730] sm:$0xff] 0.0
        %371 = vst [vmem:[%s153 + $0x738] sm:$0xff] 0.0
        %372 = vst [vmem:[%s153 + $0x740] sm:$0xff] 0.0
        %373 = vst [vmem:[%s153 + $0x748] sm:$0xff] 0.0
        %374 = vst [vmem:[%s153 + $0x750] sm:$0xff] 0.0
        %375 = vst [vmem:[%s153 + $0x758] sm:$0xff] 0.0
        %376 = vst [vmem:[%s153 + $0x760] sm:$0xff] 0.0
        %377 = vst [vmem:[%s153 + $0x768] sm:$0xff] 0.0
        %378 = vst [vmem:[%s153 + $0x770] sm:$0xff] 0.0
        %379 = vst [vmem:[%s153 + $0x778] sm:$0xff] 0.0
        %380 = vst [vmem:[%s153 + $0x780] sm:$0xff] 0.0
        %381 = vst [vmem:[%s153 + $0x788] sm:$0xff] 0.0
        %382 = vst [vmem:[%s153 + $0x790] sm:$0xff] 0.0
        %383 = vst [vmem:[%s153 + $0x798] sm:$0xff] 0.0
        %384 = vst [vmem:[%s153 + $0x7a0] sm:$0xff] 0.0
        %385 = vst [vmem:[%s153 + $0x7a8] sm:$0xff] 0.0
        %386 = vst [vmem:[%s153 + $0x7b0] sm:$0xff] 0.0
        %387 = vst [vmem:[%s153 + $0x7b8] sm:$0xff] 0.0
        %388 = vst [vmem:[%s153 + $0x7c0] sm:$0xff] 0.0
        %389 = vst [vmem:[%s153 + $0x7c8] sm:$0xff] 0.0
        %390 = vst [vmem:[%s153 + $0x7d0] sm:$0xff] 0.0
        %391 = vst [vmem:[%s153 + $0x7d8] sm:$0xff] 0.0
        %392 = vst [vmem:[%s153 + $0x7e0] sm:$0xff] 0.0
        %393 = vst [vmem:[%s153 + $0x7e8] sm:$0xff] 0.0
        %394 = vst [vmem:[%s153 + $0x7f0] sm:$0xff] 0.0
        %395 = vst [vmem:[%s153 + $0x7f8] sm:$0xff] 0.0
        %v396 = vld [vmem:[%s135] sm:$0xff]
        %v397 = vld [vmem:[%s135 + $0x8] sm:$0xff]
        %v398 = vld [vmem:[%s135 + $0x10] sm:$0xff]
        %v399 = vld [vmem:[%s135 + $0x18] sm:$0xff]
        %v400 = vld [vmem:[%s135 + $0x20] sm:$0xff]
        %v401 = vld [vmem:[%s135 + $0x28] sm:$0xff]
        %v402 = vld [vmem:[%s135 + $0x30] sm:$0xff]
        %v403 = vld [vmem:[%s135 + $0x38] sm:$0xff]
        %412 = vrot.lane.b32.xlu0 %v396, 120
        %v413 = vpop.permute.xlu0 %412
        %414 = vrot.lane.b32.xlu0 %v397, 120
        %v415 = vpop.permute.xlu0 %414
        %416 = vrot.lane.b32.xlu0 %v398, 120
        %v417 = vpop.permute.xlu0 %416
        %418 = vrot.lane.b32.xlu0 %v399, 120
        %v419 = vpop.permute.xlu0 %418
        %420 = vrot.lane.b32.xlu0 %v400, 120
        %v421 = vpop.permute.xlu0 %420
        %422 = vrot.lane.b32.xlu0 %v401, 120
        %v423 = vpop.permute.xlu0 %422
        %424 = vrot.lane.b32.xlu0 %v402, 120
        %v425 = vpop.permute.xlu0 %424
        %426 = vrot.lane.b32.xlu0 %v403, 120
        %v427 = vpop.permute.xlu0 %426
        %vm436 = vcmask 982016
        %v437 = vsel %vm436, 0.0, %v413
        %v438 = vsel %vm436, 0.0, %v415
        %v439 = vsel %vm436, 0.0, %v417
        %v440 = vsel %vm436, 0.0, %v419
        %v441 = vsel %vm436, 0.0, %v421
        %v442 = vsel %vm436, 0.0, %v423
        %v443 = vsel %vm436, 0.0, %v425
        %v444 = vsel %vm436, 0.0, %v427
        %vm445 = vcmask 64512
        %v446 = vsel %vm445, %v413, 0.0
        %v447 = vsel %vm445, %v415, 0.0
        %v448 = vsel %vm445, %v417, 0.0
        %v449 = vsel %vm445, %v419, 0.0
        %v450 = vsel %vm445, %v421, 0.0
        %v451 = vsel %vm445, %v423, 0.0
        %v452 = vsel %vm445, %v425, 0.0
        %v453 = vsel %vm445, %v427, 0.0
        %454 = vst [vmem:[%s153 + $0xf0] sm:$0xff] %v437
        %455 = vst [vmem:[%s153 + $0xf8] sm:$0xff] %v446
        %456 = vst [vmem:[%s153 + $0x100] sm:$0xff] %v438
        %457 = vst [vmem:[%s153 + $0x108] sm:$0xff] %v447
        %458 = vst [vmem:[%s153 + $0x2f0] sm:$0xff] %v439
        %459 = vst [vmem:[%s153 + $0x2f8] sm:$0xff] %v448
        %460 = vst [vmem:[%s153 + $0x300] sm:$0xff] %v440
        %461 = vst [vmem:[%s153 + $0x308] sm:$0xff] %v449
        %462 = vst [vmem:[%s153 + $0x4f0] sm:$0xff] %v441
        %463 = vst [vmem:[%s153 + $0x4f8] sm:$0xff] %v450
        %464 = vst [vmem:[%s153 + $0x500] sm:$0xff] %v442
        %465 = vst [vmem:[%s153 + $0x508] sm:$0xff] %v451
        %466 = vst [vmem:[%s153 + $0x6f0] sm:$0xff] %v443
        %467 = vst [vmem:[%s153 + $0x6f8] sm:$0xff] %v452
        %468 = vst [vmem:[%s153 + $0x700] sm:$0xff] %v444
        %469 = vst [vmem:[%s153 + $0x708] sm:$0xff] %v453
        %s470 = sand.u32 %s68, 1
        %s471 = scalar_lea.sflag [#allocation4], %s470
        %s472 = sand.u32 %s68, 1
        %s473 = smul.addr %s472, 2048
        %s474 = scalar_lea.vmem [#allocation5], %s473
        // Predicated region
        $region29: #{tpu_custom_call.1} parent=23 // pred_check
          %p475 = pneg %p78
        $region30: #{tpu_custom_call.1} parent=23 // pred_check_branch
          %477 = sbr.rel (%p475) target = $region32
        $region31: #{tpu_custom_call.1} parent=23 // pred_region
          %s478 = smul.u32 4, %s23
          %s480 = ssub.s32 32768, 32768
          %481 = vsyncadd %s471, %s480
          %s482 = smul.addr %s478, 64
          %s483 = smul.addr %s22, 256
          %s484 = sadd.s32 %s482, %s483
          %s485 = smul.addr %s484, 128
          %s486 = scalar_lea.hbm %s1, %s485
          %s487 = sshll.u32 %s474, 4
          %s488 = int_to_ptr.vmem [resolvable:$true] %s487
          %493 = dma.vmem_to_hbm [thread:$0]  %s488, 32768, %s486, %s471, 256, 256, 16
        $region32: #{tpu_custom_call.1} parent=23 // pred_fallthru
          _
      $region24: #{tpu_custom_call.1} parent=5 // pred_fallthru
        _
      %p494 = scmp.le.s32.totalorder 2, %s13
      // Predicated region
      $region33: #{tpu_custom_call.1} parent=5 // pred_check
        %p495 = pneg %p494
      $region34: #{tpu_custom_call.1} parent=5 // pred_check_branch
        %497 = sbr.rel (%p495) target = $region36
      $region35: #{tpu_custom_call.1} parent=5 // pred_region
        %s498 = ssub.s32 %s13, 2
        // Predicated region
        $region37: #{tpu_custom_call.1} parent=35 // pred_check
          %p499 = pneg %p84
        $region38: #{tpu_custom_call.1} parent=35 // pred_check_branch
          %501 = sbr.rel (%p499) target = $region40
        $region39: #{tpu_custom_call.1} parent=35 // pred_region
          %s502 = sand.u32 %s69, 1
          %s503 = scalar_lea.sflag [#allocation4], %s502
          %s504 = sand.u32 %s69, 1
          %s505 = smul.addr %s504, 2048
          %s506 = scalar_lea.vmem [#allocation5], %s505
          %507 = dma.done %s503, 32768
        $region40: #{tpu_custom_call.1} parent=35 // pred_fallthru
          _
      $region36: #{tpu_custom_call.1} parent=5 // pred_fallthru
        _
    $region6: #{tpu_custom_call.1} parent=1 // loop_footer
      %s17 = sadd.s32 1, %s13
    $region7: #{tpu_custom_call.1} parent=1 // loop_footer_branch
      %12 = sbr.rel target = $region3
    $region8: #{tpu_custom_call.1} parent=1 // loop_exit
      _
    %508 = vsyncpa [#allocation3], 1
    %s509 = scalar_lea.sflag [#allocation3], 1
    %510 = vsyncpa %s509, 1
    %511 = vsyncpa [#allocation4], 1
    %s512 = scalar_lea.sflag [#allocation4], 1
    %513 = vsyncpa %s512, 1

</llo_original>
